<compile_context>
chip_gen: v7x
topology: tpu7x:2x2x1
jax: 0.10.0
libtpu: 0.0.40
codegen_flags: <defaults>
</compile_context>

<pallas_src>
import functools

import jax
import jax.numpy as jnp
from jax.experimental import pallas as pl
from jax.experimental.pallas import tpu as pltpu


def _round_up(x, m):
    return ((x + m - 1) // m) * m


def _static_pow(x, p):
    """x ** p with plain multiplies when p is a small non-negative integer."""
    p = float(p)
    if p == int(p) and 0 <= int(p) <= 8:
        n = int(p)
        if n == 0:
            return jnp.ones_like(x)
        out = x
        for _ in range(n - 1):
            out = out * x
        return out
    return jnp.power(x, p)


def _sublane_pack(dtype):
    """Native sublane packing for a dtype: 8 (f32), 16 (bf16), 32 (int8)."""
    size = jnp.dtype(dtype).itemsize
    return max(8, 32 // max(size, 1))


def _vmem_plan():
    """(stream_budget_bytes, vmem_limit_bytes), sized per TPU generation."""
    try:
        vmem = int(pltpu.get_tpu_info().vmem_capacity_bytes)
    except Exception:
        vmem = 64 << 20  # unknown -> assume the smallest (v7x-class) part
    if vmem >= (100 << 20):      # v5e / v6e 128 MiB parts: grow tiles
        return 48 << 20, 96 << 20
    return 20 << 20, 44 << 20    # v7x-class 64 MiB: stay conservative


def _pick_tile_rows(n_rows, row_stream_bytes, row_vmem_bytes, pack,
                    stream_budget_bytes, target_step_bytes=4 << 20):
    """Row tile sized for ~target_step_bytes of streamed input per grid step."""
    if n_rows <= pack:
        return int(n_rows)                      # single full-extent block
    cap = stream_budget_bytes // max(row_vmem_bytes, 1)
    want = target_step_bytes // max(row_stream_bytes, 1)
    tile = min(cap, want)
    # Keep >= 2 grid steps when there is enough work (megacore / 2nd TC).
    tile = min(tile, _round_up((n_rows + 1) // 2, pack))
    # NOTE: for extremely large C even `pack` rows may overshoot the budget
    # (no class-axis split yet) -- see module TODO.
    tile = max(pack, (tile // pack) * pack)
    return int(tile)


# ----------------------------------------------------------------------------
# Packed kernel: C | 128, C < 128.  G = 128 // C rows folded per 128-lane row.
# ----------------------------------------------------------------------------
def _poly_focal_kernel_packed(x_ref, sel_ref, alpha_ref, o_ref, *,
                              eps, gamma, c, n_valid_rows, low_precision):
    i = pl.program_id(0)

    x = x_ref[...]                                    # (TN, 128) packed logits
    xc = x if low_precision else x.astype(jnp.float32)
    tn = x.shape[0]

    lane = jax.lax.broadcasted_iota(jnp.int32, (1, 128), 1)

    def _seg_allreduce(v, op):
        # XOR-butterfly all-reduce within aligned groups of `c` lanes.  The
        # partner lane is identified by rolling a lane-index vector alongside
        # the data, so the result does not depend on the rotation-direction
        # convention of pltpu.roll.
        s = 1
        while s < c:
            va = pltpu.roll(v, s, axis=1)
            vb = pltpu.roll(v, 128 - s, axis=1)
            la = pltpu.roll(lane, s, axis=1)
            use_a = la == (lane ^ s)                  # (1, 128) bool
            v = op(v, jnp.where(use_a, va, vb))
            s *= 2
        return v

    # Per-original-row (= per C-lane group) max and sum-exp, broadcast on all
    # lanes of the group.
    m = _seg_allreduce(xc, jnp.maximum)
    e = jnp.exp(xc - m)
    t = _seg_allreduce(e.astype(jnp.float32), jnp.add)   # f32 accumulation

    lse = m.astype(jnp.float32) + jnp.log(t)
    ce = lse - x.astype(jnp.float32)                  # valid at the target lane
    p_t = jnp.exp(-ce)
    om = jnp.maximum(1.0 - p_t, 0.0)
    pow_g = _static_pow(om, gamma)
    # alpha_t * (1-p_t)^g * ce + eps * alpha_t * (1-p_t)^(g+1), factored.
    contrib = alpha_ref[...].astype(jnp.float32) * pow_g * (ce + eps * om)

    # Keep only target lanes of valid (non-grid-padding) packed rows.  Padded
    # class-groups inside valid rows already have sel == 0 from the wrapper.
    row_ids = jax.lax.broadcasted_iota(jnp.int32, (tn, 1), 0) + i * tn
    valid = (sel_ref[...] != 0) & (row_ids < n_valid_rows)
    contrib = jnp.where(valid, contrib, 0.0)

    # Lane-dense per-tile partial sums; the wrapper does the final reduction.
    o_ref[...] = jnp.sum(contrib, axis=0, keepdims=True)     # (1, 128)


# ----------------------------------------------------------------------------
# Generic kernel: arbitrary C (kept at its natural (N, C) layout).
# ----------------------------------------------------------------------------
def _poly_focal_kernel_plain(x_ref, tgt_ref, alpha_t_ref, o_ref, *,
                             eps, gamma, n_valid_rows, low_precision):
    i = pl.program_id(0)

    x = x_ref[...]                                    # (TN, C) logits
    xc = x if low_precision else x.astype(jnp.float32)
    tn, c = x.shape

    tgt = tgt_ref[...]                                # (TN, 1) int32
    class_ids = jax.lax.broadcasted_iota(jnp.int32, (1, c), 1)
    onehot = class_ids == tgt                         # (TN, C) via broadcast

    m = jnp.max(xc, axis=-1, keepdims=True)
    e = jnp.exp(xc - m)
    se = jnp.sum(e.astype(jnp.float32), axis=-1, keepdims=True)
    lse = m.astype(jnp.float32) + jnp.log(se)
    x_t = jnp.sum(jnp.where(onehot, xc, 0.0), axis=-1,
                  keepdims=True).astype(jnp.float32)

    ce = lse - x_t                                    # (TN, 1), >= 0
    p_t = jnp.exp(-ce)
    om = jnp.maximum(1.0 - p_t, 0.0)
    pow_g = _static_pow(om, gamma)
    poly = alpha_t_ref[...] * pow_g * (ce + eps * om)

    # Grid-padding rows are masked here (no full-tile sanitize needed: all the
    # reductions above are per-row, so garbage cannot leak across rows).
    row_ids = jax.lax.broadcasted_iota(jnp.int32, (tn, 1), 0) + i * tn
    poly = jnp.where(row_ids < n_valid_rows, poly, 0.0)

    col = jnp.sum(poly, axis=0, keepdims=True)        # (1, 1)
    lane = jax.lax.broadcasted_iota(jnp.int32, (1, 128), 1)
    o_ref[...] = jnp.where(lane == 0, col, 0.0)       # (1, 128) lane-dense


# ----------------------------------------------------------------------------
# Wrapper
# ----------------------------------------------------------------------------
def poly_focal_loss(logits, targets, alpha, *, epsilon=1.0, gamma=2.0,
                    tile_rows=None, low_precision_exp=None):
    """PolyFocalLoss forward: class-index targets, reduction='mean'."""
    n, c = logits.shape

    if alpha is None:
        alpha_norm = jnp.ones((c,), jnp.float32)          # no class weighting
    else:
        if len(alpha) != c:
            raise ValueError("Alpha value is not available for all the classes.")
        alpha_norm = jnp.asarray(alpha, jnp.float32)
        alpha_norm = alpha_norm / jnp.sum(alpha_norm)     # same norm as module

    if low_precision_exp is None:
        # bf16 VALU/EUP path (v6e/v7x).  Pass False explicitly on v5e.
        low_precision_exp = (logits.dtype == jnp.bfloat16)

    tgt = targets.astype(jnp.int32)
    itemsize = jnp.dtype(logits.dtype).itemsize
    stream_budget, vmem_limit = _vmem_plan()
    compiler_params = pltpu.CompilerParams(
        dimension_semantics=("parallel",),
        vmem_limit_bytes=vmem_limit,
    )

    packed = (c < 128) and (128 % c == 0)
    if packed:
        # ---- lane-dense packed path ----------------------------------------
        g = 128 // c
        n_pad = _round_up(n, g)
        onehot = (tgt[:, None] == jnp.arange(c, dtype=jnp.int32)[None, :]
                  ).astype(jnp.int8)
        x = logits
        if n_pad != n:
            x = jnp.pad(x, ((0, n_pad - n), (0, 0)))
            onehot = jnp.pad(onehot, ((0, n_pad - n), (0, 0)))
        rows = n_pad // g
        xp = x.reshape(rows, 128)                     # free row-major reshape
        sel = onehot.reshape(rows, 128)
        alpha_lane = jnp.tile(alpha_norm, g).reshape(1, 128)

        pack = max(_sublane_pack(logits.dtype), 32)   # int8 mask wants 32 rows
        row_stream = 128 * itemsize + 128
        row_vmem = 2 * row_stream + 6 * 128 * 4 + 64
        if tile_rows is None:
            tile_rows = _pick_tile_rows(rows, row_stream, row_vmem, pack,
                                        stream_budget)
        num_tiles = pl.cdiv(rows, tile_rows)

        kernel = functools.partial(
            _poly_focal_kernel_packed, eps=float(epsilon), gamma=float(gamma),
            c=int(c), n_valid_rows=int(rows),
            low_precision=bool(low_precision_exp))

        partials = pl.pallas_call(
            kernel,
            out_shape=jax.ShapeDtypeStruct((num_tiles, 128), jnp.float32),
            grid_spec=pltpu.PrefetchScalarGridSpec(
                num_scalar_prefetch=0,
                grid=(num_tiles,),
                in_specs=[
                    pl.BlockSpec((tile_rows, 128), lambda i: (i, 0)),  # logits
                    pl.BlockSpec((tile_rows, 128), lambda i: (i, 0)),  # one-hot
                    pl.BlockSpec((1, 128), lambda i: (0, 0)),          # alpha
                ],
                out_specs=pl.BlockSpec((1, 128), lambda i: (i, 0)),
            ),
            compiler_params=compiler_params,
        )(xp, sel, alpha_lane)
    else:
        # ---- generic path ----------------------------------------------------
        alpha_t = alpha_norm[tgt].reshape(n, 1)       # tiny XLA gather
        tgt2d = tgt.reshape(n, 1)

        pack = _sublane_pack(logits.dtype)
        row_stream = c * itemsize + 8
        row_vmem = 2 * row_stream + 4 * c * 4 + 64
        if tile_rows is None:
            tile_rows = _pick_tile_rows(n, row_stream, row_vmem, pack,
                                        stream_budget)
        num_tiles = pl.cdiv(n, tile_rows)

        kernel = functools.partial(
            _poly_focal_kernel_plain, eps=float(epsilon), gamma=float(gamma),
            n_valid_rows=int(n), low_precision=bool(low_precision_exp))

        partials = pl.pallas_call(
            kernel,
            out_shape=jax.ShapeDtypeStruct((num_tiles, 128), jnp.float32),
            grid_spec=pltpu.PrefetchScalarGridSpec(
                num_scalar_prefetch=0,
                grid=(num_tiles,),
                in_specs=[
                    pl.BlockSpec((tile_rows, c), lambda i: (i, 0)),   # logits
                    pl.BlockSpec((tile_rows, 1), lambda i: (i, 0)),   # targets
                    pl.BlockSpec((tile_rows, 1), lambda i: (i, 0)),   # alpha_t
                ],
                out_specs=pl.BlockSpec((1, 128), lambda i: (i, 0)),
            ),
            compiler_params=compiler_params,
        )(logits, tgt2d, alpha_t)

    # reduction='mean'
    return jnp.sum(partials) / float(n)


def _poly_focal_ref(logits, targets, alpha, *, epsilon=1.0, gamma=2.0):
    """Pure-JAX reference mirroring the PyTorch forward (mean reduction)."""
    n, c = logits.shape
    if alpha is None:
        alpha_norm = jnp.ones((c,), jnp.float32)
    else:
        alpha_norm = jnp.asarray(alpha, jnp.float32)
        alpha_norm = alpha_norm / jnp.sum(alpha_norm)
    onehot = jax.nn.one_hot(targets, c, dtype=jnp.float32)
    log_p = jax.nn.log_softmax(logits.astype(jnp.float32), axis=-1)
    ce = -jnp.sum(onehot * log_p, axis=-1)
    p_t = jnp.exp(-ce)
    alpha_t = alpha_norm[targets]
    loss = jnp.power(1.0 - p_t, gamma) * ce * alpha_t
    poly = loss + epsilon * jnp.power(1.0 - p_t, gamma + 1.0) * alpha_t
    return jnp.mean(poly)


if __name__ == "__main__":
    key = jax.random.PRNGKey(0)
    k1, k2, k3, k4, k5, k6, k7, k8 = jax.random.split(key, 8)

    # A) Small packed-path example (C=4 -> 32 rows folded per 128-lane row).
    N, C = 16, 4
    alpha = [0.1, 0.2, 0.3, 0.4]
    logits = jax.random.normal(k1, (N, C), dtype=jnp.float32)
    targets = jax.random.randint(k2, (N,), 0, C, dtype=jnp.int32)
    out = jax.block_until_ready(poly_focal_loss(logits, targets, alpha))
    ref = _poly_focal_ref(logits, targets, alpha)
    assert jnp.allclose(out, ref, rtol=1e-5, atol=1e-6), (out, ref)

    # B) Generic path (C does not divide 128), non-divisible N -> masking.
    N2, C2 = 37, 10
    alpha2 = [float(i + 1) for i in range(C2)]
    logits2 = jax.random.normal(k3, (N2, C2), dtype=jnp.float32)
    targets2 = jax.random.randint(k4, (N2,), 0, C2, dtype=jnp.int32)
    out2 = jax.block_until_ready(poly_focal_loss(logits2, targets2, alpha2))
    ref2 = _poly_focal_ref(logits2, targets2, alpha2)
    assert jnp.allclose(out2, ref2, rtol=1e-5, atol=1e-6), (out2, ref2)

    # C) Packed path with row padding (1100 -> 1120), multiple grid steps,
    #    and grid-row masking.
    N3, C3 = 1100, 4
    logits3 = jax.random.normal(k5, (N3, C3), dtype=jnp.float32)
    targets3 = jax.random.randint(k6, (N3,), 0, C3, dtype=jnp.int32)
    out3 = jax.block_until_ready(poly_focal_loss(logits3, targets3, alpha))
    ref3 = _poly_focal_ref(logits3, targets3, alpha)
    assert jnp.allclose(out3, ref3, rtol=1e-5, atol=1e-6), (out3, ref3)

    # D) bf16 logits -> bf16 max/exp chain (loose tolerance vs f32 reference).
    N4, C4 = 128, 4
    logits4 = jax.random.normal(k7, (N4, C4), dtype=jnp.float32).astype(jnp.bfloat16)
    targets4 = jax.random.randint(k8, (N4,), 0, C4, dtype=jnp.int32)
    out4 = jax.block_until_ready(poly_focal_loss(logits4, targets4, alpha))
    ref4 = _poly_focal_ref(logits4, targets4, alpha)
    assert jnp.allclose(out4, ref4, rtol=1e-1, atol=1e-2), (out4, ref4)

    print("KERNEL_OK")
</pallas_src>

<mosaic_0001>
module attributes {stable_mosaic.version = 11 : i64} {
  func.func @_poly_focal_kernel_packed(%arg0: i32, %arg1: memref<1x128xf32, #tpu.memory_space<vmem>>, %arg2: memref<1x128xi8, #tpu.memory_space<vmem>>, %arg3: memref<1x128xf32, #tpu.memory_space<vmem>>, %arg4: memref<1x128xf32, #tpu.memory_space<vmem>>) attributes {dimension_semantics = [#tpu.dimension_semantics<parallel>], iteration_bounds = array<i64: 1>, scalar_prefetch = 0 : i64, scratch_operands = 0 : i64, tpu.core_type = #tpu.core_type<tc>, window_params = [{transform_indices = @transform_0, window_bounds = array<i64: 1, 128>}, {transform_indices = @transform_1, window_bounds = array<i64: 1, 128>}, {pipeline_mode = #tpu.pipeline_mode<synchronous>, transform_indices = @transform_2, window_bounds = array<i64: 1, 128>}, {transform_indices = @transform_3, window_bounds = array<i64: 1, 128>}]} {
    %c0 = arith.constant 0 : index
    %c0_0 = arith.constant 0 : index
    %0 = vector.load %arg1[%c0, %c0_0] : memref<1x128xf32, #tpu.memory_space<vmem>>, vector<1x128xf32>
    %1 = tpu.iota {dimensions = array<i32: 1>} : vector<1x128xi32>
    %c1_i32 = arith.constant 1 : i32
    %2 = tpu.dynamic_rotate %0 by %c1_i32 dim 1 : vector<1x128xf32>, i32 -> vector<1x128xf32>
    %c127_i32 = arith.constant 127 : i32
    %3 = tpu.dynamic_rotate %0 by %c127_i32 dim 1 : vector<1x128xf32>, i32 -> vector<1x128xf32>
    %c1_i32_1 = arith.constant 1 : i32
    %4 = tpu.dynamic_rotate %1 by %c1_i32_1 dim 1 : vector<1x128xi32>, i32 -> vector<1x128xi32>
    %c1_i32_2 = arith.constant 1 : i32
    %5 = vector.broadcast %c1_i32_2 : i32 to vector<1x128xi32>
    %6 = arith.xori %1, %5 : vector<1x128xi32>
    %7 = arith.cmpi eq, %4, %6 : vector<1x128xi32>
    %8 = arith.select %7, %2, %3 : vector<1x128xi1>, vector<1x128xf32>
    %9 = arith.maximumf %0, %8 : vector<1x128xf32>
    %c2_i32 = arith.constant 2 : i32
    %10 = tpu.dynamic_rotate %9 by %c2_i32 dim 1 : vector<1x128xf32>, i32 -> vector<1x128xf32>
    %c126_i32 = arith.constant 126 : i32
    %11 = tpu.dynamic_rotate %9 by %c126_i32 dim 1 : vector<1x128xf32>, i32 -> vector<1x128xf32>
    %c2_i32_3 = arith.constant 2 : i32
    %12 = tpu.dynamic_rotate %1 by %c2_i32_3 dim 1 : vector<1x128xi32>, i32 -> vector<1x128xi32>
    %c2_i32_4 = arith.constant 2 : i32
    %13 = vector.broadcast %c2_i32_4 : i32 to vector<1x128xi32>
    %14 = arith.xori %1, %13 : vector<1x128xi32>
    %15 = arith.cmpi eq, %12, %14 : vector<1x128xi32>
    %16 = arith.select %15, %10, %11 : vector<1x128xi1>, vector<1x128xf32>
    %17 = arith.maximumf %9, %16 : vector<1x128xf32>
    %18 = arith.subf %0, %17 : vector<1x128xf32>
    %19 = math.exp %18 : vector<1x128xf32>
    %c1_i32_5 = arith.constant 1 : i32
    %20 = tpu.dynamic_rotate %19 by %c1_i32_5 dim 1 : vector<1x128xf32>, i32 -> vector<1x128xf32>
    %c127_i32_6 = arith.constant 127 : i32
    %21 = tpu.dynamic_rotate %19 by %c127_i32_6 dim 1 : vector<1x128xf32>, i32 -> vector<1x128xf32>
    %c1_i32_7 = arith.constant 1 : i32
    %22 = tpu.dynamic_rotate %1 by %c1_i32_7 dim 1 : vector<1x128xi32>, i32 -> vector<1x128xi32>
    %c1_i32_8 = arith.constant 1 : i32
    %23 = vector.broadcast %c1_i32_8 : i32 to vector<1x128xi32>
    %24 = arith.xori %1, %23 : vector<1x128xi32>
    %25 = arith.cmpi eq, %22, %24 : vector<1x128xi32>
    %26 = arith.select %25, %20, %21 : vector<1x128xi1>, vector<1x128xf32>
    %27 = arith.addf %19, %26 : vector<1x128xf32>
    %c2_i32_9 = arith.constant 2 : i32
    %28 = tpu.dynamic_rotate %27 by %c2_i32_9 dim 1 : vector<1x128xf32>, i32 -> vector<1x128xf32>
    %c126_i32_10 = arith.constant 126 : i32
    %29 = tpu.dynamic_rotate %27 by %c126_i32_10 dim 1 : vector<1x128xf32>, i32 -> vector<1x128xf32>
    %c2_i32_11 = arith.constant 2 : i32
    %30 = tpu.dynamic_rotate %1 by %c2_i32_11 dim 1 : vector<1x128xi32>, i32 -> vector<1x128xi32>
    %c2_i32_12 = arith.constant 2 : i32
    %31 = vector.broadcast %c2_i32_12 : i32 to vector<1x128xi32>
    %32 = arith.xori %1, %31 : vector<1x128xi32>
    %33 = arith.cmpi eq, %30, %32 : vector<1x128xi32>
    %34 = arith.select %33, %28, %29 : vector<1x128xi1>, vector<1x128xf32>
    %35 = arith.addf %27, %34 : vector<1x128xf32>
    %36 = math.log %35 : vector<1x128xf32>
    %37 = arith.addf %17, %36 : vector<1x128xf32>
    %38 = arith.subf %37, %0 : vector<1x128xf32>
    %cst = arith.constant 0.000000e+00 : f32
    %39 = vector.broadcast %cst : f32 to vector<1x128xf32>
    %40 = arith.subf %39, %38 : vector<1x128xf32>
    %41 = math.exp %40 : vector<1x128xf32>
    %cst_13 = arith.constant 1.000000e+00 : f32
    %42 = vector.broadcast %cst_13 : f32 to vector<1x128xf32>
    %43 = arith.subf %42, %41 : vector<1x128xf32>
    %cst_14 = arith.constant 0.000000e+00 : f32
    %44 = vector.broadcast %cst_14 : f32 to vector<1x128xf32>
    %45 = arith.maximumf %43, %44 : vector<1x128xf32>
    %46 = arith.mulf %45, %45 : vector<1x128xf32>
    %c0_15 = arith.constant 0 : index
    %c0_16 = arith.constant 0 : index
    %47 = vector.load %arg3[%c0_15, %c0_16] : memref<1x128xf32, #tpu.memory_space<vmem>>, vector<1x128xf32>
    %48 = arith.mulf %47, %46 : vector<1x128xf32>
    %cst_17 = arith.constant 1.000000e+00 : f32
    %49 = vector.broadcast %cst_17 : f32 to vector<1x128xf32>
    %50 = arith.mulf %49, %45 : vector<1x128xf32>
    %51 = arith.addf %38, %50 : vector<1x128xf32>
    %52 = arith.mulf %48, %51 : vector<1x128xf32>
    %53 = tpu.iota {dimensions = array<i32: 0>} : vector<1x1xi32>
    %c1_i32_18 = arith.constant 1 : i32
    %54 = arith.muli %arg0, %c1_i32_18 : i32
    %55 = vector.broadcast %54 : i32 to vector<1x1xi32>
    %56 = arith.addi %53, %55 : vector<1x1xi32>
    %c0_19 = arith.constant 0 : index
    %c0_20 = arith.constant 0 : index
    %57 = vector.load %arg2[%c0_19, %c0_20] : memref<1x128xi8, #tpu.memory_space<vmem>>, vector<1x128xi8>
    %c0_i8 = arith.constant 0 : i8
    %58 = vector.broadcast %c0_i8 : i8 to vector<1x128xi8>
    %59 = arith.cmpi ne, %57, %58 : vector<1x128xi8>
    %c1_i32_21 = arith.constant 1 : i32
    %60 = vector.broadcast %c1_i32_21 : i32 to vector<1x1xi32>
    %61 = arith.cmpi slt, %56, %60 : vector<1x1xi32>
    %62 = vector.broadcast %61 : vector<1x1xi1> to vector<1x128xi1>
    %63 = arith.andi %59, %62 : vector<1x128xi1>
    %cst_22 = arith.constant 0.000000e+00 : f32
    %64 = vector.broadcast %cst_22 : f32 to vector<1x128xf32>
    %65 = arith.select %63, %52, %64 : vector<1x128xi1>, vector<1x128xf32>
    %cst_23 = arith.constant dense<0.000000e+00> : vector<128xf32>
    %66 = vector.multi_reduction <add>, %65, %cst_23 [0] : vector<1x128xf32> to vector<128xf32>
    %67 = vector.shape_cast %66 : vector<128xf32> to vector<1x128xf32>
    %c0_24 = arith.constant 0 : index
    %c0_25 = arith.constant 0 : index
    %68 = vector.load %arg4[%c0_24, %c0_25] : memref<1x128xf32, #tpu.memory_space<vmem>>, vector<1x128xf32>
    tpu.vector_store %arg4[%c0_24, %c0_25], %67 {strides = array<i32>} : memref<1x128xf32, #tpu.memory_space<vmem>>, vector<1x128xf32>,
    return
  }
  func.func @transform_0(%arg0: i32) -> (i32, i32) {
    %c0_i32 = arith.constant 0 : i32
    %c0_i32_0 = arith.constant 0 : i32
    return %arg0, %c0_i32 : i32, i32
  }
  func.func @transform_1(%arg0: i32) -> (i32, i32) {
    %c0_i32 = arith.constant 0 : i32
    %c0_i32_0 = arith.constant 0 : i32
    return %arg0, %c0_i32 : i32, i32
  }
  func.func @transform_2(%arg0: i32) -> (i32, i32) {
    %c0_i32 = arith.constant 0 : i32
    %c0_i32_0 = arith.constant 0 : i32
    %c0_i32_1 = arith.constant 0 : i32
    return %c0_i32, %c0_i32_0 : i32, i32
  }
  func.func @transform_3(%arg0: i32) -> (i32, i32) {
    %c0_i32 = arith.constant 0 : i32
    %c0_i32_0 = arith.constant 0 : i32
    return %arg0, %c0_i32 : i32, i32
  }
}

</mosaic_0001>

<llo_original>
// kernel: tpu_custom_call.1
$region0: #{tpu_custom_call.1}
  #allocation0 [shape = 'u32[]', space=smem, size = 0x4, offset = 0x4, fixed_abs, tag = 'smem constant byte address 0x4 - core index']
  #allocation1 [shape = 'u32[144,128]{1,0:T(1,128)}', space=vmem, size = 0x12000, scoped, tag = 'internal scratch']
  %s0 = inlined_call_operand.hbm [shape: f32[1,128], index: 0, kind: input, shape index: {}]
  %s1 = inlined_call_operand.vmem [shape: s8[1,128], index: 1, kind: input, shape index: {}]
  %s2 = inlined_call_operand.vmem [shape: f32[1,128], index: 2, kind: input, shape index: {}]
  %s3 = inlined_call_operand.hbm [shape: f32[1,128], index: 3, kind: output, shape index: {}]
  %s4 = sld [smem:[#allocation0]]
  $region26: #{tpu_custom_call.1} parent=0
    _
  %s6 = ssub.s32 1, %s4
  %s7 = scalar_select 0, %s6, %s4
  $region1: #{tpu_custom_call.1} parent=0
    #allocation2 [shape = 'u8[512]{0}', space=vmem, size = 0x400, scoped, tag = 'input window, operand 0, single buffered']
    #allocation3 [shape = 's32[1]{0}', space=sflag, size = 0x4, scoped, tag = 'scoped memory for tpu_custom_call.1']
    #allocation4 [shape = 's32[1]{0}', space=sflag, size = 0x4, scoped, tag = 'scoped memory for tpu_custom_call.1']
    #allocation5 [shape = 'u8[512]{0}', space=vmem, size = 0x400, scoped, tag = 'output window, operand 0, single buffered']
    %8 = vsyncpa [#allocation3], 0
    %9 = vsyncpa [#allocation4], 0
    // Predicated region
    $region2: #{tpu_custom_call.1} parent=1 // pred_check
      _
    $region3: #{tpu_custom_call.1} parent=1 // pred_check_branch
      %11 = sbr.rel (0) target = $region5
    $region4: #{tpu_custom_call.1} parent=1 // pred_region
      %s13 = ssub.s32 16, 16
      %14 = vsyncadd [#allocation3], %s13
      %s16 = sshll.u32 [#allocation2], 4
      %s17 = int_to_ptr.vmem [resolvable:$true] %s16
      %19 = dma.hbm_to_vmem [thread:$0]  %s0, 16, %s17, [#allocation3]
    $region5: #{tpu_custom_call.1} parent=1 // pred_fallthru
      _
    // Predicated region
    $region6: #{tpu_custom_call.1} parent=1 // pred_check
      _
    $region7: #{tpu_custom_call.1} parent=1 // pred_check_branch
      %21 = sbr.rel (0) target = $region9
    $region8: #{tpu_custom_call.1} parent=1 // pred_region
      _
    $region9: #{tpu_custom_call.1} parent=1 // pred_fallthru
      _
    // Predicated region
    $region10: #{tpu_custom_call.1} parent=1 // pred_check
      _
    $region11: #{tpu_custom_call.1} parent=1 // pred_check_branch
      %23 = sbr.rel (0) target = $region13
    $region12: #{tpu_custom_call.1} parent=1 // pred_region
      _
    $region13: #{tpu_custom_call.1} parent=1 // pred_fallthru
      _
    // Predicated region
    $region14: #{tpu_custom_call.1} parent=1 // pred_check
      _
    $region15: #{tpu_custom_call.1} parent=1 // pred_check_branch
      %25 = sbr.rel (0) target = $region17
    $region16: #{tpu_custom_call.1} parent=1 // pred_region
      %26 = dma.done [#allocation3], 16
    $region17: #{tpu_custom_call.1} parent=1 // pred_fallthru
      _
    %v29 = vld [vmem:[#allocation2] sm:$0x1]
    %v30 = vlaneseq
    %v31 = vand.u32 %v30, 127
    %32 = vrot.lane.b32.xlu0 %v29, 1
    %v33 = vpop.permute.xlu0 %32
    %34 = vrot.lane.b32.xlu0 %v29, 127
    %v35 = vpop.permute.xlu0 %34
    %36 = vrot.lane.b32.xlu0 %v31, 1
    %v37 = vpop.permute.xlu0 %36
    %v38 = vxor.u32 %v31, 1
    %vm39 = vcmp.eq.s32.totalorder %v37, %v38
    %v40 = vsel %vm39, %v33, %v35
    %v41 = vmax.f32 %v29, %v40
    %42 = vrot.lane.b32.xlu0 %v41, 2
    %v43 = vpop.permute.xlu0 %42
    %44 = vrot.lane.b32.xlu0 %v41, 126
    %v45 = vpop.permute.xlu0 %44
    %46 = vrot.lane.b32.xlu0 %v31, 2
    %v47 = vpop.permute.xlu0 %46
    %v48 = vxor.u32 %v31, 2
    %vm49 = vcmp.eq.s32.totalorder %v47, %v48
    %v50 = vsel %vm49, %v43, %v45
    %v51 = vmax.f32 %v41, %v50
    %v52 = vsub.f32 %v29, %v51
    %v53 = vmul.f32 %v52, 1.442695
    %v54 = vpow.pop %v53
    %55 = vrot.lane.b32.xlu0 %v54, 1
    %v56 = vpop.permute.xlu0 %55
    %57 = vrot.lane.b32.xlu0 %v54, 127
    %v58 = vpop.permute.xlu0 %57
    %v59 = vsel %vm39, %v56, %v58
    %v60 = vadd.f32 %v54, %v59
    %61 = vrot.lane.b32.xlu0 %v60, 2
    %v62 = vpop.permute.xlu0 %61
    %63 = vrot.lane.b32.xlu0 %v60, 126
    %v64 = vpop.permute.xlu0 %63
    %v65 = vsel %vm49, %v62, %v64
    %v66 = vadd.f32 %v60, %v65
    %v67 = vlog2.pop %v66
    %v68 = vmul.f32 %v67, 0.6931472
    %v69 = vadd.f32 %v51, %v68
    %v70 = vsub.f32 %v69, %v29
    %v71 = vsub.f32 0.0, %v70
    %v72 = vmul.f32 %v71, 1.442695
    %v73 = vpow.pop %v72
    %v74 = vsub.f32 1.0, %v73
    %v75 = vmax.f32 %v74, 0.0
    %v76 = vmul.f32 %v75, %v75
    %v77 = vld [vmem:[%s2] sm:$0x1]
    %v78 = vmul.f32 %v77, %v76
    %v79 = vadd.f32 %v70, %v75
    %v80 = vmul.f32 %v78, %v79
    %v81 = vlaneseq
    %v82 = vshrl.u32 %v81, 7
    %v83 = vstv 0
    %v84 = vadd.s32 %v82, %v83
    %v85 = vld [vmem:[%s1] sm:$0x1]
    %vm86 = vnez %v85
    %vm87 = vcmp.lt.s32.totalorder %v84, 1
    %v88 = vsel %vm87, 1, 0
    %vm89 = vcmp.eq.s32.totalorder %v88, 1
    %v90 = vsel %vm89, 1, 0
    %v91 = vpack.c.b16 %v90, %v90
    %v92 = vpack.c.b8 %v91, %v91
    %vm93 = vnez %v92
    %vm94 = vmand %vm86, %vm93
    %v95 = vsel %vm94, 16843009, 0
    %v96 = vunpack.c.0.s8 %v95
    %vm97 = vcmp.ne.s32.totalorder %v96, 0
    %v98 = vsel %vm97, %v80, 0.0
    %v99 = vadd.f32 %v98, 0.0
    %100 = vst [vmem:[#allocation5] sm:$0x1] %v99
    // Predicated region
    $region18: #{tpu_custom_call.1} parent=1 // pred_check
      _
    $region19: #{tpu_custom_call.1} parent=1 // pred_check_branch
      %102 = sbr.rel (0) target = $region21
    $region20: #{tpu_custom_call.1} parent=1 // pred_region
      %s104 = ssub.s32 16, 16
      %105 = vsyncadd [#allocation4], %s104
      %s107 = sshll.u32 [#allocation5], 4
      %s108 = int_to_ptr.vmem [resolvable:$true] %s107
      %110 = dma.vmem_to_hbm [thread:$0]  %s108, 16, %s3, [#allocation4]
    $region21: #{tpu_custom_call.1} parent=1 // pred_fallthru
      _
    // Predicated region
    $region22: #{tpu_custom_call.1} parent=1 // pred_check
      _
    $region23: #{tpu_custom_call.1} parent=1 // pred_check_branch
      %112 = sbr.rel (0) target = $region25
    $region24: #{tpu_custom_call.1} parent=1 // pred_region
      %113 = dma.done [#allocation4], 16
    $region25: #{tpu_custom_call.1} parent=1 // pred_fallthru
      _
    %114 = vsyncpa [#allocation3], 1
    %115 = vsyncpa [#allocation4], 1

</llo_original>
